<compile_context>
chip_gen: v5e
topology: v5e:2x2
jax: 0.10.0
libtpu: 0.0.40
codegen_flags: <defaults>
</compile_context>

<pallas_src>
import functools

import jax
import jax.numpy as jnp
from jax.experimental import pallas as pl
from jax.experimental.pallas import tpu as pltpu


def _round_up(x, m):
    return ((x + m - 1) // m) * m


def _logreg_kernel(x_ref, w_ref, b_ref, o_ref):
    # MXU matmul (bf16 operands, f32 accumulate).
    z = jnp.dot(x_ref[...], w_ref[...], preferred_element_type=jnp.float32)
    # f32 epilogue: bias add on VPU, exp + approx reciprocal on EUP.
    z = z + b_ref[...]
    o_ref[...] = pl.reciprocal(1.0 + jnp.exp(-z), approx=True).astype(o_ref.dtype)


def _choose_batch_tile(B, K_pad, N_pad, in_bytes, vmem_budget=24 * 1024 * 1024):
    """Pick a batch tile so resident W/bias + double-buffered x/out tiles fit VMEM."""
    # Weight and bias blocks are double-buffered by the pipeline even though
    # their block index never changes.
    resident = 2 * (K_pad * N_pad * in_bytes + 8 * N_pad * 4)
    avail = max(vmem_budget - resident, 1 << 20)
    per_row = 2 * (K_pad * in_bytes + N_pad * 4)   # 2x-buffered input + f32 output
    tb = max(8, min(512, avail // per_row))
    tb = max(8, (tb // 8) * 8)                      # sublane multiple
    return min(tb, _round_up(B, 8))


@functools.partial(jax.jit, static_argnames=("use_bf16",))
def logistic_regression(x, weight, bias, *, use_bf16=True):
    """y = sigmoid(x.float() @ weight + bias)

    x:      [B, x_size]
    weight: [x_size, n_classes]  (transpose of PyTorch nn.Linear.weight)
    bias:   [n_classes]
    returns [B, n_classes] f32
    """
    x = x.astype(jnp.float32)
    B, K = x.shape
    K_w, N = weight.shape
    assert K == K_w

    # Lane-dense padding: pad K and N up to multiples of 128.
    K_pad = _round_up(K, 128)
    N_pad = _round_up(N, 128)

    in_dtype = jnp.bfloat16 if use_bf16 else jnp.float32
    in_bytes = 2 if use_bf16 else 4

    TB = _choose_batch_tile(B, K_pad, N_pad, in_bytes)
    B_pad = _round_up(B, TB)
    grid = (B_pad // TB,)

    # Zero-padding is exact: padded K contributes 0 to the dot, padded N / B
    # rows are sliced away below.
    x_p = jnp.zeros((B_pad, K_pad), in_dtype).at[:B, :K].set(x.astype(in_dtype))
    w_p = jnp.zeros((K_pad, N_pad), in_dtype).at[:K, :N].set(weight.astype(in_dtype))
    b_p = jnp.zeros((1, N_pad), jnp.float32).at[0, :N].set(bias.astype(jnp.float32))

    out = pl.pallas_call(
        _logreg_kernel,
        out_shape=jax.ShapeDtypeStruct((B_pad, N_pad), jnp.float32),
        grid_spec=pltpu.PrefetchScalarGridSpec(
            num_scalar_prefetch=0,
            grid=grid,
            in_specs=[
                pl.BlockSpec((TB, K_pad), lambda i: (i, 0)),      # batch-tiled x
                pl.BlockSpec((K_pad, N_pad), lambda i: (0, 0)),   # resident weight
                pl.BlockSpec((1, N_pad), lambda i: (0, 0)),       # resident bias
            ],
            out_specs=pl.BlockSpec((TB, N_pad), lambda i: (i, 0)),
        ),
        compiler_params=pltpu.CompilerParams(
            # Independent batch tiles -> shard across TensorCores (v7x megacore).
            dimension_semantics=("parallel",),
        ),
    )(x_p, w_p, b_p)

    return out[:B, :N]


if __name__ == "__main__":
    # Deterministic params / inputs (synthetic — mirrors nn.Linear(x_size, n_classes)).
    x_size, n_classes, batch = 32, 16, 8

    key = jax.random.PRNGKey(0)
    kx, kw, kb = jax.random.split(key, 3)

    # PyTorch nn.Linear init: U(-1/sqrt(fan_in), 1/sqrt(fan_in)).
    bound = 1.0 / (x_size ** 0.5)
    # PyTorch stores weight as [n_classes, x_size]; kernel uses the transpose.
    weight_pt = jax.random.uniform(kw, (n_classes, x_size), jnp.float32, -bound, bound)
    weight = weight_pt.T
    bias = jax.random.uniform(kb, (n_classes,), jnp.float32, -bound, bound)

    x = jax.random.normal(kx, (batch, x_size), jnp.float32)

    out = logistic_regression(x, weight, bias)
    out = jax.block_until_ready(out)

    # Sanity check against plain-JAX f32 reference (bf16 MXU operands + approx
    # reciprocal => relaxed tolerance; sigmoid output error stays well below it).
    ref = jax.nn.sigmoid(x @ weight + bias)
    assert out.shape == (batch, n_classes)
    assert jnp.allclose(out, ref, atol=2e-2, rtol=2e-2), float(jnp.max(jnp.abs(out - ref)))

    print("KERNEL_OK")
</pallas_src>

<mosaic_0001>
module attributes {stable_mosaic.version = 11 : i64} {
  func.func @_logreg_kernel(%arg0: i32, %arg1: memref<8x128xbf16, #tpu.memory_space<vmem>>, %arg2: memref<128x128xbf16, #tpu.memory_space<vmem>>, %arg3: memref<1x128xf32, #tpu.memory_space<vmem>>, %arg4: memref<8x128xf32, #tpu.memory_space<vmem>>) attributes {dimension_semantics = [#tpu.dimension_semantics<parallel>], iteration_bounds = array<i64: 1>, scalar_prefetch = 0 : i64, scratch_operands = 0 : i64, tpu.core_type = #tpu.core_type<tc>, window_params = [{transform_indices = @transform_0, window_bounds = array<i64: 8, 128>}, {pipeline_mode = #tpu.pipeline_mode<synchronous>, transform_indices = @transform_1, window_bounds = array<i64: 128, 128>}, {pipeline_mode = #tpu.pipeline_mode<synchronous>, transform_indices = @transform_2, window_bounds = array<i64: 1, 128>}, {transform_indices = @transform_3, window_bounds = array<i64: 8, 128>}]} {
    %c0 = arith.constant 0 : index
    %c0_0 = arith.constant 0 : index
    %0 = vector.load %arg1[%c0, %c0_0] : memref<8x128xbf16, #tpu.memory_space<vmem>>, vector<8x128xbf16>
    %c0_1 = arith.constant 0 : index
    %c0_2 = arith.constant 0 : index
    %1 = vector.load %arg2[%c0_1, %c0_2] : memref<128x128xbf16, #tpu.memory_space<vmem>>, vector<128x128xbf16>
    %cst = arith.constant dense<0.000000e+00> : vector<8x128xf32>
    %2 = tpu.matmul %0, %1, %cst {dimension_numbers = #tpu.dot_dimension_numbers<[1], [0], [0], [1], [0, 0, 1, 1], [], []>} : vector<8x128xbf16>, vector<128x128xbf16>, vector<8x128xf32> -> vector<8x128xf32>
    %c0_3 = arith.constant 0 : index
    %c0_4 = arith.constant 0 : index
    %3 = vector.load %arg3[%c0_3, %c0_4] : memref<1x128xf32, #tpu.memory_space<vmem>>, vector<1x128xf32>
    %4 = vector.broadcast %3 : vector<1x128xf32> to vector<8x128xf32>
    %5 = arith.addf %2, %4 : vector<8x128xf32>
    %cst_5 = arith.constant 0.000000e+00 : f32
    %6 = vector.broadcast %cst_5 : f32 to vector<8x128xf32>
    %7 = arith.subf %6, %5 : vector<8x128xf32>
    %8 = math.exp %7 : vector<8x128xf32>
    %cst_6 = arith.constant 1.000000e+00 : f32
    %9 = vector.broadcast %cst_6 : f32 to vector<8x128xf32>
    %10 = arith.addf %9, %8 : vector<8x128xf32>
    %11 = tpu.reciprocal %10 {approx = true} : vector<8x128xf32> -> vector<8x128xf32>
    %c0_7 = arith.constant 0 : index
    %c0_8 = arith.constant 0 : index
    %12 = vector.load %arg4[%c0_7, %c0_8] : memref<8x128xf32, #tpu.memory_space<vmem>>, vector<8x128xf32>
    tpu.vector_store %arg4[%c0_7, %c0_8], %11 {strides = array<i32>} : memref<8x128xf32, #tpu.memory_space<vmem>>, vector<8x128xf32>,
    return
  }
  func.func @transform_0(%arg0: i32) -> (i32, i32) {
    %c0_i32 = arith.constant 0 : i32
    %c0_i32_0 = arith.constant 0 : i32
    return %arg0, %c0_i32 : i32, i32
  }
  func.func @transform_1(%arg0: i32) -> (i32, i32) {
    %c0_i32 = arith.constant 0 : i32
    %c0_i32_0 = arith.constant 0 : i32
    %c0_i32_1 = arith.constant 0 : i32
    return %c0_i32, %c0_i32_0 : i32, i32
  }
  func.func @transform_2(%arg0: i32) -> (i32, i32) {
    %c0_i32 = arith.constant 0 : i32
    %c0_i32_0 = arith.constant 0 : i32
    %c0_i32_1 = arith.constant 0 : i32
    return %c0_i32, %c0_i32_0 : i32, i32
  }
  func.func @transform_3(%arg0: i32) -> (i32, i32) {
    %c0_i32 = arith.constant 0 : i32
    %c0_i32_0 = arith.constant 0 : i32
    return %arg0, %c0_i32 : i32, i32
  }
}

</mosaic_0001>

<llo_original>
// kernel: logistic_regression.1
$region0: #{logistic_regression.1}
  #allocation0 [shape = 'u32[]', space=smem, size = 0x4, offset = 0x4, fixed_abs, tag = 'smem constant byte address 0x4 - core index']
  #allocation1 [shape = 'u32[72,128]{1,0:T(1,128)}', space=vmem, size = 0x9000, scoped, tag = 'internal scratch']
  %s0 = inlined_call_operand.vmem [shape: bf16[8,128], index: 0, kind: input, shape index: {}]
  %s1 = inlined_call_operand.vmem [shape: bf16[128,128], index: 1, kind: input, shape index: {}]
  %s2 = inlined_call_operand.vmem [shape: f32[1,128], index: 2, kind: input, shape index: {}]
  %s3 = inlined_call_operand.hbm [shape: f32[8,128], index: 3, kind: output, shape index: {}]
  %s4 = sld [smem:[#allocation0]]
  $region22: #{logistic_regression.1} parent=0
    _
  %s6 = ssub.s32 1, %s4
  %s7 = scalar_select 0, %s6, %s4
  $region1: #{logistic_regression.1} parent=0
    #allocation2 [shape = 'u8[4096]{0}', space=vmem, size = 0x1000, scoped, tag = 'output window, operand 0, single buffered']
    #allocation3 [shape = 's32[1]{0}', space=sflag, size = 0x4, scoped, tag = 'scoped memory for logistic_regression.1']
    %8 = vsyncpa [#allocation3], 0
    // Predicated region
    $region2: #{logistic_regression.1} parent=1 // pred_check
      _
    $region3: #{logistic_regression.1} parent=1 // pred_check_branch
      %10 = sbr.rel (0) target = $region5
    $region4: #{logistic_regression.1} parent=1 // pred_region
      _
    $region5: #{logistic_regression.1} parent=1 // pred_fallthru
      _
    // Predicated region
    $region6: #{logistic_regression.1} parent=1 // pred_check
      _
    $region7: #{logistic_regression.1} parent=1 // pred_check_branch
      %12 = sbr.rel (0) target = $region9
    $region8: #{logistic_regression.1} parent=1 // pred_region
      _
    $region9: #{logistic_regression.1} parent=1 // pred_fallthru
      _
    // Predicated region
    $region10: #{logistic_regression.1} parent=1 // pred_check
      _
    $region11: #{logistic_regression.1} parent=1 // pred_check_branch
      %14 = sbr.rel (0) target = $region13
    $region12: #{logistic_regression.1} parent=1 // pred_region
      _
    $region13: #{logistic_regression.1} parent=1 // pred_fallthru
      _
    %v15 = vld [vmem:[%s0] sm:$0xf]
    %v16 = vld [vmem:[%s1] sm:$0xf]
    %v17 = vld [vmem:[%s1 + $0x4] sm:$0xf]
    %v18 = vld [vmem:[%s1 + $0x8] sm:$0xf]
    %v19 = vld [vmem:[%s1 + $0xc] sm:$0xf]
    %v20 = vld [vmem:[%s1 + $0x10] sm:$0xf]
    %v21 = vld [vmem:[%s1 + $0x14] sm:$0xf]
    %v22 = vld [vmem:[%s1 + $0x18] sm:$0xf]
    %v23 = vld [vmem:[%s1 + $0x1c] sm:$0xf]
    %v24 = vld [vmem:[%s1 + $0x20] sm:$0xf]
    %v25 = vld [vmem:[%s1 + $0x24] sm:$0xf]
    %v26 = vld [vmem:[%s1 + $0x28] sm:$0xf]
    %v27 = vld [vmem:[%s1 + $0x2c] sm:$0xf]
    %v28 = vld [vmem:[%s1 + $0x30] sm:$0xf]
    %v29 = vld [vmem:[%s1 + $0x34] sm:$0xf]
    %v30 = vld [vmem:[%s1 + $0x38] sm:$0xf]
    %v31 = vld [vmem:[%s1 + $0x3c] sm:$0xf]
    %v32 = vld [vmem:[%s2] sm:$0x1]
    %v34 = vperm.slane %v32, 0
    %v52 = vunpack.c.l.b16 %v16
    %v53 = vunpack.c.l.b16 %v17
    %v54 = vunpack.c.l.b16 %v18
    %v55 = vunpack.c.l.b16 %v19
    %v56 = vunpack.c.l.b16 %v20
    %v57 = vunpack.c.l.b16 %v21
    %v58 = vunpack.c.l.b16 %v22
    %v59 = vunpack.c.l.b16 %v23
    %v60 = vunpack.c.l.b16 %v24
    %v61 = vunpack.c.l.b16 %v25
    %v62 = vunpack.c.l.b16 %v26
    %v63 = vunpack.c.l.b16 %v27
    %v64 = vunpack.c.l.b16 %v28
    %v65 = vunpack.c.l.b16 %v29
    %v66 = vunpack.c.l.b16 %v30
    %v67 = vunpack.c.l.b16 %v31
    %v68 = vpack.c.b16 %v53, %v52
    %v69 = vpack.c.b16 %v55, %v54
    %v70 = vpack.c.b16 %v57, %v56
    %v71 = vpack.c.b16 %v59, %v58
    %v72 = vpack.c.b16 %v61, %v60
    %v73 = vpack.c.b16 %v63, %v62
    %v74 = vpack.c.b16 %v65, %v64
    %v75 = vpack.c.b16 %v67, %v66
    %84 = vmatpush.bf16.msra.mxu0 %v75
    %85 = vmatpush.bf16.msra.mxu0 %v74
    %86 = vmatpush.bf16.msra.mxu0 %v73
    %87 = vmatpush.bf16.msra.mxu0 %v72
    %88 = vmatpush.bf16.msra.mxu0 %v71
    %89 = vmatpush.bf16.msra.mxu0 %v70
    %90 = vmatpush.bf16.msra.mxu0 %v69
    %91 = vmatpush.bf16.msra.mxu0 %v68
    %92 = vmatmul.bf16.gmra.mxu0 %v15
    %v93 = vpop.f32.mrf.mxu0
    %v94 = vadd.f32 %v34, %v93
    %v95 = vpop.f32.mrf.mxu0
    %96 = vdwg.mxu0
    %v97 = vsub.f32 0.0, %v94
    %v98 = vmul.f32 %v97, 1.442695
    %v99 = vpow.pop %v98
    %v100 = vadd.f32 %v99, 1.0
    %v101 = vrcp.pop %v100
    %102 = vst [vmem:[#allocation2] sm:$0xff] %v101
    // Predicated region
    $region14: #{logistic_regression.1} parent=1 // pred_check
      _
    $region15: #{logistic_regression.1} parent=1 // pred_check_branch
      %104 = sbr.rel (0) target = $region17
    $region16: #{logistic_regression.1} parent=1 // pred_region
      %106 = vsyncadd [#allocation3], 0
      %s108 = sshll.u32 [#allocation2], 4
      %s109 = int_to_ptr.vmem [resolvable:$true] %s108
      %s110 = sshll.u32 %s3, 4
      %s111 = int_to_ptr.hbm [resolvable:$true] %s110
      %113 = dma.vmem_to_hbm [thread:$0]  %s109, 128, %s111, [#allocation3]
    $region17: #{logistic_regression.1} parent=1 // pred_fallthru
      _
    // Predicated region
    $region18: #{logistic_regression.1} parent=1 // pred_check
      _
    $region19: #{logistic_regression.1} parent=1 // pred_check_branch
      %115 = sbr.rel (0) target = $region21
    $region20: #{logistic_regression.1} parent=1 // pred_region
      %117 = dma.done [#allocation3], 128
    $region21: #{logistic_regression.1} parent=1 // pred_fallthru
      _
    %118 = vsyncpa [#allocation3], 1

</llo_original>
